<compile_context>
chip_gen: v7x
topology: tpu7x:2x2x1
jax: 0.10.0
libtpu: 0.0.40
codegen_flags: <defaults>
</compile_context>

<pallas_src>
import math

import jax
import jax.numpy as jnp
from jax.experimental import pallas as pl
from jax.experimental.pallas import tpu as pltpu


def _round_up(x, m):
    return ((x + m - 1) // m) * m


def _ceil_div(a, b):
    return -(-a // b)


def timestep_embedding_kernel(temp_ref, freq_ref, phase_ref, w1_ref, b1_ref,
                              w2_ref, b2_ref, out_ref):
    # temp_ref  : (TILE_B, 1)     f32   timesteps
    # freq_ref  : (1, E)          f32   [freqs | freqs]
    # phase_ref : (1, E)          f32   [0 ... 0 | pi/2 ... pi/2]
    # w1_ref    : (E, Hp)         bf16  first Linear (lane-dense padded)
    # b1_ref    : (1, Hp)         f32
    # w2_ref    : (Hp, TILE_O)    bf16  second Linear (lane-dense padded, O-tiled)
    # b2_ref    : (1, TILE_O)     f32
    # out_ref   : (TILE_B, TILE_O) f32

    # Sinusoidal embedding [sin(arg) | cos(arg)] via cos(x) = sin(x + pi/2):
    # one EUP sin over the full E lanes, no concatenate, no split matmul.
    arg = temp_ref[...] * freq_ref[...] + phase_ref[...]      # (TILE_B, E)
    emb = jnp.sin(arg)

    # First Linear: single K=E matmul, bf16 operands, f32 accumulation.
    h = (jnp.dot(emb.astype(w1_ref.dtype), w1_ref[...],
                 preferred_element_type=jnp.float32)
         + b1_ref[...])

    # LeakyReLU(0.2) — where() matches the reference (incl. NaN behavior).
    h = jnp.where(h > 0.0, h, 0.2 * h)

    # Second Linear on this O-tile.
    out = (jnp.dot(h.astype(w2_ref.dtype), w2_ref[...],
                   preferred_element_type=jnp.float32)
           + b2_ref[...])
    out_ref[...] = out.astype(out_ref.dtype)


def timestep_embedding(temp, w1, b1, w2, b2, embedding_dim, *,
                       tile_b_max=256, weight_dtype=jnp.bfloat16):
    """temp: (B,) float timesteps. w1: (E, H), w2: (H, O) stored as (in, out),
    i.e. y = x @ W + b (equivalent to PyTorch's x @ W_pt.T + b).
    Returns (B, O) float32."""
    assert embedding_dim % 2 == 0, "kernel assumes even embedding_dim"
    half = embedding_dim // 2
    assert half >= 2, "half must be >= 2 (scale uses half - 1)"
    B = temp.shape[0]
    E, H = w1.shape
    assert E == embedding_dim
    O = w2.shape[1]

    f32 = jnp.float32
    wbytes = jnp.dtype(weight_dtype).itemsize
    fbytes = 4

    # ---- Feature padding (lane-dense, multiples of 128) + O-tiling. ----
    Hp = _round_up(H, 128)
    Op0 = _round_up(O, 128)
    max_w2_block_bytes = 16 << 20          # cap resident W2 block (v7x VMEM)
    if Hp * Op0 * wbytes <= max_w2_block_bytes:
        tile_o = Op0
    else:
        tile_o = max(256, (max_w2_block_bytes // (Hp * wbytes)) // 256 * 256)
    Op = _round_up(O, tile_o)
    n_o = Op // tile_o

    # ---- Batch tiling: minimal padding, expose >=2 steps for megacore. ----
    n_b = max(1, _ceil_div(B, tile_b_max))
    if n_b == 1 and B > 32:
        n_b = 2                            # give v7x's 2nd TensorCore work
    tile_b = _round_up(_ceil_div(B, n_b), 8)
    Bp = tile_b * n_b

    # ---- Host-side parameter packing (zero padding keeps the math exact:
    # padded hidden cols see b1=0 -> LeakyReLU(0)=0 -> times zero W2 rows;
    # padded O cols / batch rows are sliced off). ----
    temp2d = jnp.zeros((Bp, 1), f32).at[:B, 0].set(temp.astype(f32))

    neg_scale = -math.log(10000.0) / (half - 1)    # layers.get_timestep_embedding
    freq_half = jnp.exp(jnp.arange(half, dtype=f32) * neg_scale)
    freq_full = jnp.concatenate([freq_half, freq_half]).reshape(1, E)
    phase = jnp.concatenate([jnp.zeros((half,), f32),
                             jnp.full((half,), jnp.pi / 2.0, f32)]).reshape(1, E)

    w1_p = jnp.zeros((E, Hp), weight_dtype).at[:, :H].set(w1.astype(weight_dtype))
    b1_p = jnp.zeros((1, Hp), f32).at[:, :H].set(b1.astype(f32).reshape(1, H))
    w2_p = jnp.zeros((Hp, Op), weight_dtype).at[:H, :O].set(w2.astype(weight_dtype))
    b2_p = jnp.zeros((1, Op), f32).at[:, :O].set(b2.astype(f32).reshape(1, O))

    # ---- Explicit VMEM budget (single-buffered weights, double-buffered
    # temp/out, plus in-kernel intermediates) with headroom. ----
    vmem_bytes = (
        2 * tile_b * fbytes                    # temp tile (double-buffered)
        + 2 * E * fbytes                       # freq + phase
        + E * Hp * wbytes                      # W1
        + Hp * fbytes                          # b1
        + Hp * tile_o * wbytes                 # W2 block
        + tile_o * fbytes                      # b2 block
        + 2 * tile_b * tile_o * fbytes         # out tile (double-buffered)
        + tile_b * E * (fbytes + wbytes)       # emb f32 + bf16 cast
        + tile_b * Hp * (fbytes + wbytes)      # h f32 + bf16 cast
        + tile_b * tile_o * fbytes             # out f32 intermediate
    )
    vmem_limit = min(int(vmem_bytes * 1.5) + (2 << 20), 64 << 20)

    cost = pl.CostEstimate(
        flops=2 * Bp * Hp * (E + Op),
        transcendentals=Bp * E,
        bytes_accessed=((E * Hp + Hp * Op) * wbytes
                        + (Hp + Op + 2 * E) * fbytes
                        + Bp * fbytes + Bp * Op * fbytes),
    )

    # Grid: O-tiles outermost (W2 block changes rarely), batch tiles innermost.
    resident = lambda j, i: (0, 0)
    single = pl.Buffered(1)
    out_p = pl.pallas_call(
        timestep_embedding_kernel,
        out_shape=jax.ShapeDtypeStruct((Bp, Op), f32),
        grid=(n_o, n_b),
        in_specs=[
            pl.BlockSpec((tile_b, 1), lambda j, i: (i, 0)),                    # temp
            pl.BlockSpec((1, E), resident, pipeline_mode=single),              # freqs
            pl.BlockSpec((1, E), resident, pipeline_mode=single),              # phase
            pl.BlockSpec((E, Hp), resident, pipeline_mode=single),             # W1
            pl.BlockSpec((1, Hp), resident, pipeline_mode=single),             # b1
            pl.BlockSpec((Hp, tile_o), lambda j, i: (0, j), pipeline_mode=single),  # W2
            pl.BlockSpec((1, tile_o), lambda j, i: (0, j), pipeline_mode=single),   # b2
        ],
        out_specs=pl.BlockSpec((tile_b, tile_o), lambda j, i: (i, j)),
        compiler_params=pltpu.CompilerParams(
            dimension_semantics=("parallel", "parallel"),
            vmem_limit_bytes=vmem_limit),
        cost_estimate=cost,
    )(temp2d, freq_full, phase, w1_p, b1_p, w2_p, b2_p)

    return out_p[:B, :O]


def _reference(temp, w1, b1, w2, b2, embedding_dim):
    half = embedding_dim // 2
    scale = math.log(10000.0) / (half - 1)
    freqs = jnp.exp(jnp.arange(half, dtype=jnp.float32) * -scale)
    arg = temp.astype(jnp.float32)[:, None] * freqs[None, :]
    emb = jnp.concatenate([jnp.sin(arg), jnp.cos(arg)], axis=1)
    h = emb @ w1 + b1
    h = jnp.where(h > 0, h, 0.2 * h)
    return h @ w2 + b2


if __name__ == "__main__":
    embedding_dim = 32
    hidden_dim = 64
    output_dim = 64
    B = 8

    key = jax.random.PRNGKey(0)
    k_t, k_w1, k_b1, k_w2, k_b2 = jax.random.split(key, 5)

    # Deterministic synthetic parameters (nn.Linear weights stored transposed
    # as (in, out)).
    temp = jax.random.uniform(k_t, (B,), jnp.float32, 0.0, 1000.0)
    w1 = jax.random.normal(k_w1, (embedding_dim, hidden_dim), jnp.float32) * 0.05
    b1 = jax.random.normal(k_b1, (hidden_dim,), jnp.float32) * 0.01
    w2 = jax.random.normal(k_w2, (hidden_dim, output_dim), jnp.float32) * 0.05
    b2 = jax.random.normal(k_b2, (output_dim,), jnp.float32) * 0.01

    out = timestep_embedding(temp, w1, b1, w2, b2, embedding_dim)
    out = jax.block_until_ready(out)

    ref = _reference(temp, w1, b1, w2, b2, embedding_dim)
    assert out.shape == (B, output_dim)
    # Tolerance loosened vs. the all-f32 version: weights are bf16 on the MXU
    # (f32 accumulation), per the perf review.
    assert jnp.allclose(out, ref, atol=1e-2, rtol=1e-2), "mismatch vs reference"

    print("KERNEL_OK")
</pallas_src>

<mosaic_0001>
module attributes {stable_mosaic.version = 11 : i64} {
  func.func @timestep_embedding_kernel(%arg0: i32, %arg1: i32, %arg2: memref<8x1xf32, #tpu.memory_space<vmem>>, %arg3: memref<1x32xf32, #tpu.memory_space<vmem>>, %arg4: memref<1x32xf32, #tpu.memory_space<vmem>>, %arg5: memref<32x128xbf16, #tpu.memory_space<vmem>>, %arg6: memref<1x128xf32, #tpu.memory_space<vmem>>, %arg7: memref<128x128xbf16, #tpu.memory_space<vmem>>, %arg8: memref<1x128xf32, #tpu.memory_space<vmem>>, %arg9: memref<8x128xf32, #tpu.memory_space<vmem>>) attributes {dimension_semantics = [#tpu.dimension_semantics<parallel>, #tpu.dimension_semantics<parallel>], iteration_bounds = array<i64: 1, 1>, scalar_prefetch = 0 : i64, scratch_operands = 0 : i64, tpu.core_type = #tpu.core_type<tc>, window_params = [{transform_indices = @transform_0, window_bounds = array<i64: 8, 1>}, {pipeline_mode = #tpu.pipeline_mode<synchronous>, transform_indices = @transform_1, window_bounds = array<i64: 1, 32>}, {pipeline_mode = #tpu.pipeline_mode<synchronous>, transform_indices = @transform_2, window_bounds = array<i64: 1, 32>}, {pipeline_mode = #tpu.pipeline_mode<synchronous>, transform_indices = @transform_3, window_bounds = array<i64: 32, 128>}, {pipeline_mode = #tpu.pipeline_mode<synchronous>, transform_indices = @transform_4, window_bounds = array<i64: 1, 128>}, {pipeline_mode = #tpu.pipeline_mode<synchronous>, transform_indices = @transform_5, window_bounds = array<i64: 128, 128>}, {pipeline_mode = #tpu.pipeline_mode<synchronous>, transform_indices = @transform_6, window_bounds = array<i64: 1, 128>}, {transform_indices = @transform_7, window_bounds = array<i64: 8, 128>}]} {
    %c0 = arith.constant 0 : index
    %c0_0 = arith.constant 0 : index
    %0 = vector.load %arg2[%c0, %c0_0] : memref<8x1xf32, #tpu.memory_space<vmem>>, vector<8x1xf32>
    %c0_1 = arith.constant 0 : index
    %c0_2 = arith.constant 0 : index
    %1 = vector.load %arg3[%c0_1, %c0_2] : memref<1x32xf32, #tpu.memory_space<vmem>>, vector<1x32xf32>
    %2 = vector.broadcast %0 : vector<8x1xf32> to vector<8x32xf32>
    %3 = vector.broadcast %1 : vector<1x32xf32> to vector<8x32xf32>
    %4 = arith.mulf %2, %3 : vector<8x32xf32>
    %c0_3 = arith.constant 0 : index
    %c0_4 = arith.constant 0 : index
    %5 = vector.load %arg4[%c0_3, %c0_4] : memref<1x32xf32, #tpu.memory_space<vmem>>, vector<1x32xf32>
    %6 = vector.broadcast %5 : vector<1x32xf32> to vector<8x32xf32>
    %7 = arith.addf %4, %6 : vector<8x32xf32>
    %8 = math.sin %7 : vector<8x32xf32>
    %9 = arith.truncf %8 : vector<8x32xf32> to vector<8x32xbf16>
    %c0_5 = arith.constant 0 : index
    %c0_6 = arith.constant 0 : index
    %10 = vector.load %arg5[%c0_5, %c0_6] : memref<32x128xbf16, #tpu.memory_space<vmem>>, vector<32x128xbf16>
    %cst = arith.constant dense<0.000000e+00> : vector<8x128xf32>
    %11 = tpu.matmul %9, %10, %cst {dimension_numbers = #tpu.dot_dimension_numbers<[1], [0], [0], [1], [0, 0, 1, 1], [], []>} : vector<8x32xbf16>, vector<32x128xbf16>, vector<8x128xf32> -> vector<8x128xf32>
    %c0_7 = arith.constant 0 : index
    %c0_8 = arith.constant 0 : index
    %12 = vector.load %arg6[%c0_7, %c0_8] : memref<1x128xf32, #tpu.memory_space<vmem>>, vector<1x128xf32>
    %13 = vector.broadcast %12 : vector<1x128xf32> to vector<8x128xf32>
    %14 = arith.addf %11, %13 : vector<8x128xf32>
    %cst_9 = arith.constant 0.000000e+00 : f32
    %15 = vector.broadcast %cst_9 : f32 to vector<8x128xf32>
    %16 = arith.cmpf ogt, %14, %15 : vector<8x128xf32>
    %cst_10 = arith.constant 2.000000e-01 : f32
    %17 = vector.broadcast %cst_10 : f32 to vector<8x128xf32>
    %18 = arith.mulf %17, %14 : vector<8x128xf32>
    %19 = arith.select %16, %14, %18 : vector<8x128xi1>, vector<8x128xf32>
    %20 = arith.truncf %19 : vector<8x128xf32> to vector<8x128xbf16>
    %c0_11 = arith.constant 0 : index
    %c0_12 = arith.constant 0 : index
    %21 = vector.load %arg7[%c0_11, %c0_12] : memref<128x128xbf16, #tpu.memory_space<vmem>>, vector<128x128xbf16>
    %cst_13 = arith.constant dense<0.000000e+00> : vector<8x128xf32>
    %22 = tpu.matmul %20, %21, %cst_13 {dimension_numbers = #tpu.dot_dimension_numbers<[1], [0], [0], [1], [0, 0, 1, 1], [], []>} : vector<8x128xbf16>, vector<128x128xbf16>, vector<8x128xf32> -> vector<8x128xf32>
    %c0_14 = arith.constant 0 : index
    %c0_15 = arith.constant 0 : index
    %23 = vector.load %arg8[%c0_14, %c0_15] : memref<1x128xf32, #tpu.memory_space<vmem>>, vector<1x128xf32>
    %24 = vector.broadcast %23 : vector<1x128xf32> to vector<8x128xf32>
    %25 = arith.addf %22, %24 : vector<8x128xf32>
    %c0_16 = arith.constant 0 : index
    %c0_17 = arith.constant 0 : index
    %26 = vector.load %arg9[%c0_16, %c0_17] : memref<8x128xf32, #tpu.memory_space<vmem>>, vector<8x128xf32>
    tpu.vector_store %arg9[%c0_16, %c0_17], %25 {strides = array<i32>} : memref<8x128xf32, #tpu.memory_space<vmem>>, vector<8x128xf32>,
    return
  }
  func.func @transform_0(%arg0: i32, %arg1: i32) -> (i32, i32) {
    %c0_i32 = arith.constant 0 : i32
    %c0_i32_0 = arith.constant 0 : i32
    return %arg1, %c0_i32 : i32, i32
  }
  func.func @transform_1(%arg0: i32, %arg1: i32) -> (i32, i32) {
    %c0_i32 = arith.constant 0 : i32
    %c0_i32_0 = arith.constant 0 : i32
    %c0_i32_1 = arith.constant 0 : i32
    return %c0_i32, %c0_i32_0 : i32, i32
  }
  func.func @transform_2(%arg0: i32, %arg1: i32) -> (i32, i32) {
    %c0_i32 = arith.constant 0 : i32
    %c0_i32_0 = arith.constant 0 : i32
    %c0_i32_1 = arith.constant 0 : i32
    return %c0_i32, %c0_i32_0 : i32, i32
  }
  func.func @transform_3(%arg0: i32, %arg1: i32) -> (i32, i32) {
    %c0_i32 = arith.constant 0 : i32
    %c0_i32_0 = arith.constant 0 : i32
    %c0_i32_1 = arith.constant 0 : i32
    return %c0_i32, %c0_i32_0 : i32, i32
  }
  func.func @transform_4(%arg0: i32, %arg1: i32) -> (i32, i32) {
    %c0_i32 = arith.constant 0 : i32
    %c0_i32_0 = arith.constant 0 : i32
    %c0_i32_1 = arith.constant 0 : i32
    return %c0_i32, %c0_i32_0 : i32, i32
  }
  func.func @transform_5(%arg0: i32, %arg1: i32) -> (i32, i32) {
    %c0_i32 = arith.constant 0 : i32
    %c0_i32_0 = arith.constant 0 : i32
    return %c0_i32, %arg0 : i32, i32
  }
  func.func @transform_6(%arg0: i32, %arg1: i32) -> (i32, i32) {
    %c0_i32 = arith.constant 0 : i32
    %c0_i32_0 = arith.constant 0 : i32
    return %c0_i32, %arg0 : i32, i32
  }
  func.func @transform_7(%arg0: i32, %arg1: i32) -> (i32, i32) {
    %c0_i32 = arith.constant 0 : i32
    return %arg1, %arg0 : i32, i32
  }
}

</mosaic_0001>

<llo_original>
// kernel: tpu_custom_call.1
$region0: #{tpu_custom_call.1}
  #allocation0 [shape = 'u32[]', space=smem, size = 0x4, offset = 0x4, fixed_abs, tag = 'smem constant byte address 0x4 - core index']
  #allocation1 [shape = 'u32[144,128]{1,0:T(1,128)}', space=vmem, size = 0x12000, scoped, tag = 'internal scratch']
  %s0 = inlined_call_operand.vmem [shape: f32[8,1], index: 0, kind: input, shape index: {}]
  %s1 = inlined_call_operand.vmem [shape: f32[1,32], index: 1, kind: input, shape index: {}]
  %s2 = inlined_call_operand.vmem [shape: f32[1,32], index: 2, kind: input, shape index: {}]
  %s3 = inlined_call_operand.vmem [shape: bf16[32,128], index: 3, kind: input, shape index: {}]
  %s4 = inlined_call_operand.vmem [shape: f32[1,128], index: 4, kind: input, shape index: {}]
  %s5 = inlined_call_operand.hbm [shape: bf16[128,128], index: 5, kind: input, shape index: {}]
  %s6 = inlined_call_operand.vmem [shape: f32[1,128], index: 6, kind: input, shape index: {}]
  %s7 = inlined_call_operand.hbm [shape: f32[8,128], index: 7, kind: output, shape index: {}]
  %s8 = sld [smem:[#allocation0]]
  $region42: #{tpu_custom_call.1} parent=0
    _
  %s10 = ssub.s32 1, %s8
  %s11 = scalar_select 0, %s10, %s8
  $region1: #{tpu_custom_call.1} parent=0
    #allocation2 [shape = 'u8[32768]{0}', space=vmem, size = 0x8000, scoped, tag = 'input window, operand 5, single buffered']
    #allocation3 [shape = 's32[1]{0}', space=sflag, size = 0x4, scoped, tag = 'scoped memory for tpu_custom_call.1']
    #allocation4 [shape = 's32[1]{0}', space=sflag, size = 0x4, scoped, tag = 'scoped memory for tpu_custom_call.1']
    #allocation5 [shape = 'u8[4096]{0}', space=vmem, size = 0x1000, scoped, tag = 'output window, operand 0, single buffered']
    %12 = vsyncpa [#allocation3], 0
    %13 = vsyncpa [#allocation4], 0
    // Predicated region
    $region2: #{tpu_custom_call.1} parent=1 // pred_check
      _
    $region3: #{tpu_custom_call.1} parent=1 // pred_check_branch
      %15 = sbr.rel (0) target = $region5
    $region4: #{tpu_custom_call.1} parent=1 // pred_region
      _
    $region5: #{tpu_custom_call.1} parent=1 // pred_fallthru
      _
    // Predicated region
    $region6: #{tpu_custom_call.1} parent=1 // pred_check
      _
    $region7: #{tpu_custom_call.1} parent=1 // pred_check_branch
      %17 = sbr.rel (0) target = $region9
    $region8: #{tpu_custom_call.1} parent=1 // pred_region
      _
    $region9: #{tpu_custom_call.1} parent=1 // pred_fallthru
      _
    // Predicated region
    $region10: #{tpu_custom_call.1} parent=1 // pred_check
      _
    $region11: #{tpu_custom_call.1} parent=1 // pred_check_branch
      %19 = sbr.rel (0) target = $region13
    $region12: #{tpu_custom_call.1} parent=1 // pred_region
      _
    $region13: #{tpu_custom_call.1} parent=1 // pred_fallthru
      _
    // Predicated region
    $region14: #{tpu_custom_call.1} parent=1 // pred_check
      _
    $region15: #{tpu_custom_call.1} parent=1 // pred_check_branch
      %21 = sbr.rel (0) target = $region17
    $region16: #{tpu_custom_call.1} parent=1 // pred_region
      _
    $region17: #{tpu_custom_call.1} parent=1 // pred_fallthru
      _
    // Predicated region
    $region18: #{tpu_custom_call.1} parent=1 // pred_check
      _
    $region19: #{tpu_custom_call.1} parent=1 // pred_check_branch
      %23 = sbr.rel (0) target = $region21
    $region20: #{tpu_custom_call.1} parent=1 // pred_region
      _
    $region21: #{tpu_custom_call.1} parent=1 // pred_fallthru
      _
    // Predicated region
    $region22: #{tpu_custom_call.1} parent=1 // pred_check
      _
    $region23: #{tpu_custom_call.1} parent=1 // pred_check_branch
      %25 = sbr.rel (0) target = $region25
    $region24: #{tpu_custom_call.1} parent=1 // pred_region
      %s27 = ssub.s32 1024, 1024
      %28 = vsyncadd [#allocation3], %s27
      %s29 = sshll.u32 [#allocation2], 4
      %s30 = int_to_ptr.vmem [resolvable:$true] %s29
      %35 = dma.hbm_to_vmem [thread:$0]  %s5, 1024, %s30, [#allocation3], 64, 64, 4
    $region25: #{tpu_custom_call.1} parent=1 // pred_fallthru
      _
    // Predicated region
    $region26: #{tpu_custom_call.1} parent=1 // pred_check
      _
    $region27: #{tpu_custom_call.1} parent=1 // pred_check_branch
      %37 = sbr.rel (0) target = $region29
    $region28: #{tpu_custom_call.1} parent=1 // pred_region
      _
    $region29: #{tpu_custom_call.1} parent=1 // pred_fallthru
      _
    // Predicated region
    $region30: #{tpu_custom_call.1} parent=1 // pred_check
      _
    $region31: #{tpu_custom_call.1} parent=1 // pred_check_branch
      %39 = sbr.rel (0) target = $region33
    $region32: #{tpu_custom_call.1} parent=1 // pred_region
      %40 = dma.done [#allocation3], 1024
    $region33: #{tpu_custom_call.1} parent=1 // pred_fallthru
      _
    %v42 = vld [vmem:[%s0] sm:$0xff]
    %v43 = vld [vmem:[%s1] sm:$0x1]
    %45 = vset.pattern.permute.xlu0 0
    %46 = vperm.xlu0 %45, %v42
    %v47 = vpop.permute.xlu0 %46
    %v50 = vlaneseq
    %v51 = vshrl.u32 %v50, 7
    %v52 = vsub.s32 0, %v51
    %v53 = vrot.slane %v43, %v52
    %v55 = vmul.f32 %v47, %v53
    %v56 = vld [vmem:[%s2] sm:$0x1]
    %v58 = vlaneseq
    %v59 = vshrl.u32 %v58, 7
    %v60 = vsub.s32 0, %v59
    %v61 = vrot.slane %v56, %v60
    %v63 = vadd.f32 %v55, %v61
    %v64 = vand.u32 2147483647, %v63
    %vm65 = vcmp.le.f32.partialorder %v64, 0.7853982
    %vm66 = vcmp.lt.s32.totalorder %v63, 0
    %v67 = vand.u32 %v63, 2139095040
    %v68 = vshrl.u32 %v67, 23
    %v69 = vsub.s32 %v68, 127
    %v70 = vand.u32 2147483647, %v63
    %v71 = vand.u32 %v70, 8388607
    %v72 = vor.u32 %v71, 8388608
    %v73 = vsub.s32 0, %v72
    %v74 = vadd.s32 %v69, 1
    %vm75 = vcmp.gt.s32.totalorder %v74, 0
    %v76 = vsel %vm75, %v74, 0
    %v77 = vshrl.u32 %v76, 5
    %v78 = vand.u32 %v76, 31
    %v79 = vsub.s32 32, %v78
    %v80 = vshrl.u32 683565275, %v79
    %v81 = vshll.u32 683565275, %v78
    %v82 = vshrl.u32 2475754826, %v79
    %v83 = vor.u32 %v81, %v82
    %v84 = vshll.u32 2475754826, %v78
    %v85 = vshrl.u32 2131351028, %v79
    %v86 = vor.u32 %v84, %v85
    %v87 = vshll.u32 2131351028, %v78
    %v88 = vshrl.u32 2102212464, %v79
    %v89 = vor.u32 %v87, %v88
    %v90 = vshll.u32 2102212464, %v78
    %v91 = vshrl.u32 920167782, %v79
    %v92 = vor.u32 %v90, %v91
    %v93 = vshll.u32 920167782, %v78
    %v94 = vshrl.u32 1326507024, %v79
    %v95 = vor.u32 %v93, %v94
    %vm96 = vcmp.lt.s32.totalorder %v77, 1
    %vm97 = vcmp.lt.s32.totalorder %v77, 2
    %vm98 = vcmp.lt.s32.totalorder %v77, 3
    %vm99 = vcmp.lt.s32.totalorder %v77, 4
    %v100 = vsel %vm96, %v80, %v83
    %v101 = vsel %vm99, %v89, 2102212464
    %v102 = vsel %vm98, %v86, %v101
    %v103 = vsel %vm97, %v100, %v102
    %v104 = vsel %vm96, %v83, %v86
    %v105 = vsel %vm99, %v92, 920167782
    %v106 = vsel %vm98, %v89, %v105
    %v107 = vsel %vm97, %v104, %v106
    %v108 = vsel %vm96, %v86, %v89
    %v109 = vsel %vm99, %v95, 1326507024
    %v110 = vsel %vm98, %v92, %v109
    %v111 = vsel %vm97, %v108, %v110
    %v112 = vshll.u32 %v72, 8
    %v113 = vmul.u32.u64.compose %v112, %v111
    %v114 = vextract.low.u32 %v113
    %v115 = vextract.high.u32 %v113
    %v116 = vmul.u32.u64.compose %v112, %v107
    %v117 = vextract.low.u32 %v116
    %v118 = vextract.high.u32 %v116
    %v119 = vmul.u32 %v112, %v103
    %v120 = vadd.s32 %v115, %v117
    %vm121 = vc.u32 %v115, %v117
    %v122 = vadd.s32 %v118, 1
    %v123 = vsel %vm121, %v122, %v118
    %v124 = vadd.s32 %v119, %v123
    %v125 = vadd.s32 %v124, 536870912
    %v126 = vshrl.u32 %v125, 30
    %v127 = vshll.u32 %v126, 30
    %v128 = vsub.s32 %v124, %v127
    %vm129 = vcmp.lt.s32.totalorder %v128, 0
    %v130 = vsub.s32 0, %v128
    %v131 = vsel %vm129, %v130, %v128
    %v132 = vclz %v131
    %v133 = vsub.s32 %v132, 2
    %vm134 = vcmp.gt.s32.totalorder 0, %v133
    %v135 = vsel %vm134, 0, %v133
    %v136 = vsub.s32 32, %v135
    %v137 = vshll.u32 %v128, %v135
    %v138 = vshrl.u32 %v120, %v136
    %v139 = vor.u32 %v137, %v138
    %v140 = vsub.s32 4294967266, %v135
    %v141 = vadd.s32 %v140, 127
    %v142 = vshll.u32 %v141, 23
    %v143 = vor.u32 4788187, %v142
    %v144 = vand.u32 2147483647, %v143
    %v146 = vcvt.s32.f32 %v139
    %v147 = vmul.f32 %v146, %v144
    %v148 = vxor.u32 %v147, 2147483648
    %v149 = vsel %vm66, %v148, %v147
    %v150 = vsub.s32 4, %v126
    %v151 = vsel %vm66, %v150, %v126
    %v152 = vsel %vm65, %v63, %v149
    %v153 = vsel %vm65, 0, %v151
    %v154 = vcosq.f32.pop %v152
    %v155 = vsinq.f32.pop %v152
    %vm156 = vweird.f32 %v63
    %v157 = vadd.s32 %v153, 3
    %v158 = vand.u32 %v157, 3
    %vm159 = vcmp.lt.s32.totalorder %v158, 2
    %vm160 = vcmp.eq.s32.totalorder %v158, 0
    %v161 = vxor.u32 %v155, 2147483648
    %v162 = vsel %vm160, %v154, %v161
    %vm163 = vcmp.eq.s32.totalorder %v158, 2
    %v164 = vxor.u32 %v154, 2147483648
    %v165 = vsel %vm163, %v164, %v155
    %v166 = vsel %vm159, %v162, %v165
    %v167 = vsel %vm156, nan, %v166
    %v168 = vpack.c.bf16 %v167, %v167
    %v169 = vld [vmem:[%s3] sm:$0xf]
    %v170 = vld [vmem:[%s3 + $0x4] sm:$0xf]
    %v171 = vld [vmem:[%s3 + $0x8] sm:$0xf]
    %v172 = vld [vmem:[%s3 + $0xc] sm:$0xf]
    %v173 = vld [vmem:[%s4] sm:$0x1]
    %v175 = vlaneseq
    %v176 = vshrl.u32 %v175, 7
    %v177 = vsub.s32 0, %v176
    %v178 = vrot.slane %v173, %v177
    %v184 = vunpack.c.l.b16 %v169
    %v185 = vunpack.c.l.b16 %v170
    %v186 = vunpack.c.l.b16 %v171
    %v187 = vunpack.c.l.b16 %v172
    %v188 = vpack.c.b16 %v185, %v184
    %v189 = vpack.c.b16 %v187, %v186
    %vm192 = vcmask 261120
    %v194 = vsel %vm192, %v168, 0
    %196 = vmatprep.subr.bf16.mxu0 0
    %197 = vmatpush1.bf16.msra.mxu0 %v188
    %198 = vmatprep.subr.bf16.mxu0 0
    %199 = vmatpush1.bf16.msra.mxu0 %v189
    %200 = vmatprep.subr.bf16.mxu0 0
    %201 = vmatpush1.bf16.msra.mxu0 0
    %202 = vmatprep.subr.bf16.mxu0 0
    %203 = vmatpush1.bf16.msra.mxu0 0
    %204 = vmatprep.subr.bf16.mxu0 0
    %205 = vmatpush1.bf16.msra.mxu0 0
    %206 = vmatprep.subr.bf16.mxu0 0
    %207 = vmatpush1.bf16.msra.mxu0 0
    %208 = vmatprep.subr.bf16.mxu0 0
    %209 = vmatpush1.bf16.msra.mxu0 0
    %210 = vmatprep.subr.bf16.mxu0 0
    %211 = vmatpush1.bf16.msra.mxu0 0
    %212 = vmatprep.subr.bf16.mxu0 0
    %213 = vmatpush1.bf16.msra.mxu0 0
    %214 = vmatprep.subr.bf16.mxu0 0
    %215 = vmatpush1.bf16.msra.mxu0 0
    %216 = vmatprep.subr.bf16.mxu0 0
    %217 = vmatpush1.bf16.msra.mxu0 0
    %218 = vmatprep.subr.bf16.mxu0 0
    %219 = vmatpush1.bf16.msra.mxu0 0
    %220 = vmatprep.subr.bf16.mxu0 0
    %221 = vmatpush1.bf16.msra.mxu0 0
    %222 = vmatprep.subr.bf16.mxu0 0
    %223 = vmatpush1.bf16.msra.mxu0 0
    %224 = vmatprep.subr.bf16.mxu0 0
    %225 = vmatpush1.bf16.msra.mxu0 0
    %226 = vmatprep.subr.bf16.mxu0 0
    %227 = vmatpush1.bf16.msra.mxu0 0
    %228 = vmatprep.mubr.bf16.mxu0 0
    %229 = vmatmul.mubr.bf16.gmra.mrb[0].mxu0 %v194
    %v230 = vpop.f32.mrb[0].mxu0
    %v231 = vadd.f32 %v178, %v230
    %v232 = vpop.f32.mrb[0].mxu0
    %v233 = vpop.f32.mrb[0].mxu0
    %v234 = vpop.f32.mrb[0].mxu0
    %235 = vdwg.mxu0
    %vm236 = vcmp.gt.f32.partialorder %v231, 0.0
    %v237 = vmul.f32 %v231, 0.2
    %v238 = vsel %vm236, %v231, %v237
    %v239 = vpack.c.bf16 %v238, %v238
    %v240 = vld [vmem:[#allocation2] sm:$0xf]
    %v241 = vld [vmem:[#allocation2 + $0x4] sm:$0xf]
    %v242 = vld [vmem:[#allocation2 + $0x8] sm:$0xf]
    %v243 = vld [vmem:[#allocation2 + $0xc] sm:$0xf]
    %v244 = vld [vmem:[#allocation2 + $0x10] sm:$0xf]
    %v245 = vld [vmem:[#allocation2 + $0x14] sm:$0xf]
    %v246 = vld [vmem:[#allocation2 + $0x18] sm:$0xf]
    %v247 = vld [vmem:[#allocation2 + $0x1c] sm:$0xf]
    %v248 = vld [vmem:[#allocation2 + $0x20] sm:$0xf]
    %v249 = vld [vmem:[#allocation2 + $0x24] sm:$0xf]
    %v250 = vld [vmem:[#allocation2 + $0x28] sm:$0xf]
    %v251 = vld [vmem:[#allocation2 + $0x2c] sm:$0xf]
    %v252 = vld [vmem:[#allocation2 + $0x30] sm:$0xf]
    %v253 = vld [vmem:[#allocation2 + $0x34] sm:$0xf]
    %v254 = vld [vmem:[#allocation2 + $0x38] sm:$0xf]
    %v255 = vld [vmem:[#allocation2 + $0x3c] sm:$0xf]
    %v256 = vld [vmem:[%s6] sm:$0x1]
    %v258 = vlaneseq
    %v259 = vshrl.u32 %v258, 7
    %v260 = vsub.s32 0, %v259
    %v261 = vrot.slane %v256, %v260
    %v279 = vunpack.c.l.b16 %v240
    %v280 = vunpack.c.l.b16 %v241
    %v281 = vunpack.c.l.b16 %v242
    %v282 = vunpack.c.l.b16 %v243
    %v283 = vunpack.c.l.b16 %v244
    %v284 = vunpack.c.l.b16 %v245
    %v285 = vunpack.c.l.b16 %v246
    %v286 = vunpack.c.l.b16 %v247
    %v287 = vunpack.c.l.b16 %v248
    %v288 = vunpack.c.l.b16 %v249
    %v289 = vunpack.c.l.b16 %v250
    %v290 = vunpack.c.l.b16 %v251
    %v291 = vunpack.c.l.b16 %v252
    %v292 = vunpack.c.l.b16 %v253
    %v293 = vunpack.c.l.b16 %v254
    %v294 = vunpack.c.l.b16 %v255
    %v295 = vpack.c.b16 %v280, %v279
    %v296 = vpack.c.b16 %v282, %v281
    %v297 = vpack.c.b16 %v284, %v283
    %v298 = vpack.c.b16 %v286, %v285
    %v299 = vpack.c.b16 %v288, %v287
    %v300 = vpack.c.b16 %v290, %v289
    %v301 = vpack.c.b16 %v292, %v291
    %v302 = vpack.c.b16 %v294, %v293
    %311 = vmatprep.subr.bf16.mxu0 0
    %312 = vmatpush1.bf16.msra.mxu0 %v295
    %313 = vmatprep.subr.bf16.mxu0 0
    %314 = vmatpush1.bf16.msra.mxu0 %v296
    %315 = vmatprep.subr.bf16.mxu0 0
    %316 = vmatpush1.bf16.msra.mxu0 %v297
    %317 = vmatprep.subr.bf16.mxu0 0
    %318 = vmatpush1.bf16.msra.mxu0 %v298
    %319 = vmatprep.subr.bf16.mxu0 0
    %320 = vmatpush1.bf16.msra.mxu0 %v299
    %321 = vmatprep.subr.bf16.mxu0 0
    %322 = vmatpush1.bf16.msra.mxu0 %v300
    %323 = vmatprep.subr.bf16.mxu0 0
    %324 = vmatpush1.bf16.msra.mxu0 %v301
    %325 = vmatprep.subr.bf16.mxu0 0
    %326 = vmatpush1.bf16.msra.mxu0 %v302
    %327 = vmatprep.subr.bf16.mxu0 0
    %328 = vmatpush1.bf16.msra.mxu0 0
    %329 = vmatprep.subr.bf16.mxu0 0
    %330 = vmatpush1.bf16.msra.mxu0 0
    %331 = vmatprep.subr.bf16.mxu0 0
    %332 = vmatpush1.bf16.msra.mxu0 0
    %333 = vmatprep.subr.bf16.mxu0 0
    %334 = vmatpush1.bf16.msra.mxu0 0
    %335 = vmatprep.subr.bf16.mxu0 0
    %336 = vmatpush1.bf16.msra.mxu0 0
    %337 = vmatprep.subr.bf16.mxu0 0
    %338 = vmatpush1.bf16.msra.mxu0 0
    %339 = vmatprep.subr.bf16.mxu0 0
    %340 = vmatpush1.bf16.msra.mxu0 0
    %341 = vmatprep.subr.bf16.mxu0 0
    %342 = vmatpush1.bf16.msra.mxu0 0
    %343 = vmatprep.mubr.bf16.mxu0 0
    %344 = vmatmul.mubr.bf16.gmra.mrb[0].mxu0 %v239
    %v345 = vpop.f32.mrb[0].mxu0
    %v346 = vadd.f32 %v261, %v345
    %v347 = vpop.f32.mrb[0].mxu0
    %v348 = vpop.f32.mrb[0].mxu0
    %v349 = vpop.f32.mrb[0].mxu0
    %350 = vdwg.mxu0
    %351 = vst [vmem:[#allocation5] sm:$0xff] %v346
    // Predicated region
    $region34: #{tpu_custom_call.1} parent=1 // pred_check
      _
    $region35: #{tpu_custom_call.1} parent=1 // pred_check_branch
      %353 = sbr.rel (0) target = $region37
    $region36: #{tpu_custom_call.1} parent=1 // pred_region
      %s355 = ssub.s32 128, 128
      %356 = vsyncadd [#allocation4], %s355
      %s358 = sshll.u32 [#allocation5], 4
      %s359 = int_to_ptr.vmem [resolvable:$true] %s358
      %361 = dma.vmem_to_hbm [thread:$0]  %s359, 128, %s7, [#allocation4]
    $region37: #{tpu_custom_call.1} parent=1 // pred_fallthru
      _
    // Predicated region
    $region38: #{tpu_custom_call.1} parent=1 // pred_check
      _
    $region39: #{tpu_custom_call.1} parent=1 // pred_check_branch
      %363 = sbr.rel (0) target = $region41
    $region40: #{tpu_custom_call.1} parent=1 // pred_region
      %364 = dma.done [#allocation4], 128
    $region41: #{tpu_custom_call.1} parent=1 // pred_fallthru
      _
    %365 = vsyncpa [#allocation3], 1
    %366 = vsyncpa [#allocation4], 1

</llo_original>
